<compile_context>
chip_gen: v6e
topology: v6e:2x2x1
jax: 0.10.0
libtpu: 0.0.40
codegen_flags: <defaults>
</compile_context>

<pallas_src>
import functools

import jax
import jax.numpy as jnp
from jax.experimental import pallas as pl
from jax.experimental.pallas import tpu as pltpu

_LANE = 128
_SUBLANE = 8


def _round_up(n, m):
    return ((n + m - 1) // m) * m


def _vmem_capacity_bytes():
    try:
        return int(pltpu.get_tpu_info().vmem_capacity_bytes)
    except Exception:
        return 64 * 1024 * 1024  # v7x per-TC value: the safe lower bound


# --------------------------------------------------------------------------
# Kernels
# --------------------------------------------------------------------------
def _mlp_resident_kernel(x_ref, w1_ref, w2_ref, o_ref):
    """Fused matmul -> relu -> matmul, both weights VMEM-resident."""
    x = x_ref[...].astype(w1_ref.dtype)                 # per-tile bf16 cast (VPU)
    h = jnp.dot(x, w1_ref[...], preferred_element_type=jnp.float32)
    h = jnp.maximum(h, 0.0)                             # relu on f32 accumulator
    o_ref[...] = jnp.dot(h.astype(w2_ref.dtype), w2_ref[...],
                         preferred_element_type=jnp.float32).astype(o_ref.dtype)


def _mlp_htiled_kernel(x_ref, w1_ref, w2_ref, o_ref, acc_ref):
    """Hidden-dim-tiled fallback: accumulate fc2 partial sums over H chunks.

    relu is elementwise over the hidden dim, so relu(x@W1)[:, chunk] ==
    relu(x@W1[:, chunk]) and chunked accumulation is exact.
    """
    j = pl.program_id(1)

    @pl.when(j == 0)
    def _():
        acc_ref[...] = jnp.zeros_like(acc_ref)

    x = x_ref[...].astype(w1_ref.dtype)
    h = jnp.dot(x, w1_ref[...], preferred_element_type=jnp.float32)
    h = jnp.maximum(h, 0.0)
    acc_ref[...] += jnp.dot(h.astype(w2_ref.dtype), w2_ref[...],
                            preferred_element_type=jnp.float32)

    @pl.when(j == pl.num_programs(1) - 1)
    def _():
        o_ref[...] = acc_ref[...].astype(o_ref.dtype)


# --------------------------------------------------------------------------
# Wrapper
# --------------------------------------------------------------------------
def prepare_block_weights(w1, w2, compute_dtype=jnp.bfloat16):
    """Transpose + zero-pad + cast the PyTorch-layout weights ONCE.

    w1: (H, K) fc1.weight  -> (K, Hp) padded, transposed, compute_dtype
    w2: (N, H) fc2.weight  -> (Hp, Np) padded, transposed, compute_dtype
    Zero-padding is semantics-preserving (padded hidden/output columns
    contribute nothing / are sliced off).
    """
    H, K = w1.shape
    N, _ = w2.shape
    Hp = _round_up(H, _LANE)
    Np = _round_up(N, _LANE)
    w1_t = jnp.zeros((K, Hp), compute_dtype).at[:, :H].set(w1.T.astype(compute_dtype))
    w2_t = jnp.zeros((Hp, Np), compute_dtype).at[:H, :N].set(w2.T.astype(compute_dtype))
    return w1_t, w2_t


def block_forward(x, w1_t, w2_t, output_dim, *, max_tile_m=1024):
    """y = relu(x @ fc1.weight.T) @ fc2.weight.T  with pre-prepared weights.

    x:    (B, K) activations (any float dtype; cast to bf16 in-kernel)
    w1_t: (K, Hp) from prepare_block_weights
    w2_t: (Hp, Np) from prepare_block_weights
    """
    B, K = x.shape
    Kw, Hp = w1_t.shape
    assert Kw == K, "w1_t must be prepared for this input_dim"
    Hp2, Np = w2_t.shape
    assert Hp2 == Hp

    out_dtype = x.dtype
    bpe_x = jnp.dtype(x.dtype).itemsize
    bpe_w = jnp.dtype(w1_t.dtype).itemsize
    bpe_o = jnp.dtype(out_dtype).itemsize

    # Per-chip VMEM budget with headroom below the physical per-core limit.
    vmem_cap = _vmem_capacity_bytes()
    vmem_limit = int(vmem_cap * 0.8)           # ~51 MiB on v7x, ~102 MiB on v5e/v6e
    budget = int(vmem_limit * 0.9)

    # Conservatively assume the constant-index weight blocks are double-buffered.
    w_res_bytes = 2 * (K * Hp + Hp * Np) * bpe_w
    # Per batch-row VMEM in the resident path: 2x x tile, bf16 x copy, 2x out
    # tile, f32 hidden intermediate, f32 second-dot result.
    per_row_res = 2 * K * bpe_x + K * bpe_w + 2 * Np * bpe_o + Hp * 4 + Np * 4
    use_resident = (w_res_bytes + 128 * per_row_res) <= budget

    compiler_common = dict(vmem_limit_bytes=vmem_limit)

    if use_resident:
        # ----------------- weights-resident fast path -----------------
        tm_cap = (budget - w_res_bytes) // per_row_res
        tm = int(min(max_tile_m, tm_cap, _round_up(B, _SUBLANE)))
        # v7x megacore: keep >=2 grid steps when the batch is big enough.
        if B >= 1024 and tm >= _round_up(B, _SUBLANE):
            tm = _round_up(-(-B // 2), _SUBLANE)
        # MXU-friendly rounding of the second-minor dim (256-row passes on
        # v6e/v7x; 16-row sublane pairs for bf16).
        if tm >= 256:
            tm = (tm // 256) * 256
        elif tm >= 128:
            tm = 128
        elif tm >= 16:
            tm = (tm // 16) * 16
        else:
            tm = max(_SUBLANE, (tm // _SUBLANE) * _SUBLANE)

        Bp = _round_up(B, tm)
        x_p = x
        if Bp != B:
            x_p = jnp.zeros((Bp, K), x.dtype).at[:B, :].set(x)

        grid = (Bp // tm,)
        flops = 2 * Bp * (K * Hp + Hp * Np)
        bytes_accessed = (Bp * K * bpe_x + (K * Hp + Hp * Np) * bpe_w
                          + Bp * Np * bpe_o)

        out = pl.pallas_call(
            _mlp_resident_kernel,
            out_shape=jax.ShapeDtypeStruct((Bp, Np), out_dtype),
            grid=grid,
            in_specs=[
                # x block last dim == full array dim -> exempt from 128 rule.
                pl.BlockSpec((tm, K), lambda i: (i, 0)),
                pl.BlockSpec((K, Hp), lambda i: (0, 0)),   # fc1 weights resident
                pl.BlockSpec((Hp, Np), lambda i: (0, 0)),  # fc2 weights resident
            ],
            out_specs=pl.BlockSpec((tm, Np), lambda i: (i, 0)),  # lane-dense store
            compiler_params=pltpu.CompilerParams(
                dimension_semantics=("parallel",), **compiler_common),
            cost_estimate=pl.CostEstimate(
                flops=flops, transcendentals=0, bytes_accessed=bytes_accessed),
        )(x_p, w1_t, w2_t)
        return out[:B, :output_dim]

    # ----------------- hidden-dim-tiled fallback -----------------
    tm = int(min(max_tile_m, _round_up(B, _SUBLANE)))
    if tm >= 256:
        tm = (tm // 256) * 256
    elif tm >= 128:
        tm = 128
    elif tm >= 16:
        tm = (tm // 16) * 16
    else:
        tm = max(_SUBLANE, (tm // _SUBLANE) * _SUBLANE)

    # Largest hidden chunk (multiple of 128, dividing Hp) that fits the budget.
    th = _LANE
    for c in range(1, Hp // _LANE + 1):
        if Hp % c:
            continue
        cand = Hp // c
        if cand % _LANE:
            continue
        need = (2 * (K * cand + cand * Np) * bpe_w          # dbl-buffered weight tiles
                + 2 * tm * K * bpe_x + tm * K * bpe_w       # x tiles + bf16 copy
                + 2 * tm * Np * bpe_o                       # out tiles
                + tm * Np * 4 + tm * cand * 4)              # f32 acc + hidden chunk
        if need <= budget:
            th = cand
            break

    Bp = _round_up(B, tm)
    x_p = x
    if Bp != B:
        x_p = jnp.zeros((Bp, K), x.dtype).at[:B, :].set(x)

    grid = (Bp // tm, Hp // th)
    flops = 2 * Bp * (K * Hp + Hp * Np)
    bytes_accessed = ((Bp // tm) * 0 + Bp * K * bpe_x
                      + (K * Hp + Hp * Np) * bpe_w * (Bp // tm)
                      + Bp * Np * bpe_o)

    out = pl.pallas_call(
        _mlp_htiled_kernel,
        out_shape=jax.ShapeDtypeStruct((Bp, Np), out_dtype),
        grid=grid,
        in_specs=[
            pl.BlockSpec((tm, K), lambda i, j: (i, 0)),
            pl.BlockSpec((K, th), lambda i, j: (0, j)),
            pl.BlockSpec((th, Np), lambda i, j: (j, 0)),
        ],
        out_specs=pl.BlockSpec((tm, Np), lambda i, j: (i, 0)),
        scratch_shapes=[pltpu.VMEM((tm, Np), jnp.float32)],
        compiler_params=pltpu.CompilerParams(
            dimension_semantics=("parallel", "arbitrary"), **compiler_common),
        cost_estimate=pl.CostEstimate(
            flops=flops, transcendentals=0, bytes_accessed=bytes_accessed),
    )(x_p, w1_t, w2_t)
    return out[:B, :output_dim]


if __name__ == "__main__":
    key = jax.random.PRNGKey(0)
    k_x, k_w1, k_w2 = jax.random.split(key, 3)

    # Small-but-real shapes: enough batch to exercise the batch-tiled grid.
    B, input_dim, hidden_dim, output_dim = 256, 32, 64, 16

    x = jax.random.normal(k_x, (B, input_dim), dtype=jnp.float32)

    # nn.Linear default-style init, PyTorch weight layout:
    # fc1.weight (H, K), fc2.weight (N, H).
    w1 = jax.random.uniform(
        k_w1, (hidden_dim, input_dim), dtype=jnp.float32,
        minval=-1.0 / jnp.sqrt(input_dim), maxval=1.0 / jnp.sqrt(input_dim))
    w2 = jax.random.uniform(
        k_w2, (output_dim, hidden_dim), dtype=jnp.float32,
        minval=-1.0 / jnp.sqrt(hidden_dim), maxval=1.0 / jnp.sqrt(hidden_dim))

    # Hoisted: transpose / zero-pad / bf16-cast the weights ONCE.
    w1_t, w2_t = prepare_block_weights(w1, w2)

    fwd = jax.jit(functools.partial(block_forward, output_dim=output_dim))
    out = fwd(x, w1_t, w2_t)
    jax.block_until_ready(out)

    # Reference (matches PyTorch Block.forward semantics, f32).
    ref = jnp.maximum(x @ w1.T, 0.0) @ w2.T
    assert out.shape == (B, output_dim)
    assert out.dtype == x.dtype
    # bf16 MXU operands with f32 accumulation -> loosened tolerance.
    assert jnp.allclose(out, ref, atol=2e-2, rtol=2e-2), (
        f"mismatch vs reference: max abs err {jnp.max(jnp.abs(out - ref))}")

    print("KERNEL_OK")
</pallas_src>

<mosaic_0001>
module attributes {stable_mosaic.version = 11 : i64} {
  func.func @_mlp_resident_kernel(%arg0: i32, %arg1: memref<256x32xf32, #tpu.memory_space<vmem>>, %arg2: memref<32x128xbf16, #tpu.memory_space<vmem>>, %arg3: memref<128x128xbf16, #tpu.memory_space<vmem>>, %arg4: memref<256x128xf32, #tpu.memory_space<vmem>>) attributes {dimension_semantics = [#tpu.dimension_semantics<parallel>], iteration_bounds = array<i64: 1>, scalar_prefetch = 0 : i64, scratch_operands = 0 : i64, tpu.core_type = #tpu.core_type<tc>, window_params = [{transform_indices = @transform_0, window_bounds = array<i64: 256, 32>}, {pipeline_mode = #tpu.pipeline_mode<synchronous>, transform_indices = @transform_1, window_bounds = array<i64: 32, 128>}, {pipeline_mode = #tpu.pipeline_mode<synchronous>, transform_indices = @transform_2, window_bounds = array<i64: 128, 128>}, {transform_indices = @transform_3, window_bounds = array<i64: 256, 128>}]} {
    %c0 = arith.constant 0 : index
    %c0_0 = arith.constant 0 : index
    %0 = vector.load %arg1[%c0, %c0_0] : memref<256x32xf32, #tpu.memory_space<vmem>>, vector<256x32xf32>
    %1 = arith.truncf %0 : vector<256x32xf32> to vector<256x32xbf16>
    %c0_1 = arith.constant 0 : index
    %c0_2 = arith.constant 0 : index
    %2 = vector.load %arg2[%c0_1, %c0_2] : memref<32x128xbf16, #tpu.memory_space<vmem>>, vector<32x128xbf16>
    %cst = arith.constant dense<0.000000e+00> : vector<256x128xf32>
    %3 = tpu.matmul %1, %2, %cst {dimension_numbers = #tpu.dot_dimension_numbers<[1], [0], [0], [1], [0, 0, 1, 1], [], []>} : vector<256x32xbf16>, vector<32x128xbf16>, vector<256x128xf32> -> vector<256x128xf32>
    %cst_3 = arith.constant 0.000000e+00 : f32
    %4 = vector.broadcast %cst_3 : f32 to vector<256x128xf32>
    %5 = arith.maximumf %3, %4 : vector<256x128xf32>
    %6 = arith.truncf %5 : vector<256x128xf32> to vector<256x128xbf16>
    %c0_4 = arith.constant 0 : index
    %c0_5 = arith.constant 0 : index
    %7 = vector.load %arg3[%c0_4, %c0_5] : memref<128x128xbf16, #tpu.memory_space<vmem>>, vector<128x128xbf16>
    %cst_6 = arith.constant dense<0.000000e+00> : vector<256x128xf32>
    %8 = tpu.matmul %6, %7, %cst_6 {dimension_numbers = #tpu.dot_dimension_numbers<[1], [0], [0], [1], [0, 0, 1, 1], [], []>} : vector<256x128xbf16>, vector<128x128xbf16>, vector<256x128xf32> -> vector<256x128xf32>
    %c0_7 = arith.constant 0 : index
    %c0_8 = arith.constant 0 : index
    %9 = vector.load %arg4[%c0_7, %c0_8] : memref<256x128xf32, #tpu.memory_space<vmem>>, vector<256x128xf32>
    tpu.vector_store %arg4[%c0_7, %c0_8], %8 {strides = array<i32>} : memref<256x128xf32, #tpu.memory_space<vmem>>, vector<256x128xf32>,
    return
  }
  func.func @transform_0(%arg0: i32) -> (i32, i32) {
    %c0_i32 = arith.constant 0 : i32
    %c0_i32_0 = arith.constant 0 : i32
    return %arg0, %c0_i32 : i32, i32
  }
  func.func @transform_1(%arg0: i32) -> (i32, i32) {
    %c0_i32 = arith.constant 0 : i32
    %c0_i32_0 = arith.constant 0 : i32
    %c0_i32_1 = arith.constant 0 : i32
    return %c0_i32, %c0_i32_0 : i32, i32
  }
  func.func @transform_2(%arg0: i32) -> (i32, i32) {
    %c0_i32 = arith.constant 0 : i32
    %c0_i32_0 = arith.constant 0 : i32
    %c0_i32_1 = arith.constant 0 : i32
    return %c0_i32, %c0_i32_0 : i32, i32
  }
  func.func @transform_3(%arg0: i32) -> (i32, i32) {
    %c0_i32 = arith.constant 0 : i32
    %c0_i32_0 = arith.constant 0 : i32
    return %arg0, %c0_i32 : i32, i32
  }
}

</mosaic_0001>

<llo_original>
// kernel: block_forward.1
$region0: #{block_forward.1}
  #allocation0 [shape = 'u32[]', space=smem, size = 0x4, offset = 0x4, fixed_abs, tag = 'smem constant byte address 0x4 - core index']
  #allocation1 [shape = 'u32[144,128]{1,0:T(1,128)}', space=vmem, size = 0x12000, scoped, tag = 'internal scratch']
  %s0 = inlined_call_operand.vmem [shape: f32[256,32], index: 0, kind: input, shape index: {}]
  %s1 = inlined_call_operand.vmem [shape: bf16[32,128], index: 1, kind: input, shape index: {}]
  %s2 = inlined_call_operand.vmem [shape: bf16[128,128], index: 2, kind: input, shape index: {}]
  %s3 = inlined_call_operand.vmem [shape: f32[256,128], index: 3, kind: output, shape index: {}]
  %s4 = sld [smem:[#allocation0]]
  $region22: #{block_forward.1} parent=0
    _
  %s6 = ssub.s32 1, %s4
  %s7 = scalar_select 0, %s6, %s4
  // Predicated region
  $region2: #{block_forward.1} parent=0 // pred_check
    _
  $region3: #{block_forward.1} parent=0 // pred_check_branch
    %9 = sbr.rel (0) target = $region5
  $region4: #{block_forward.1} parent=0 // pred_region
    _
  $region5: #{block_forward.1} parent=0 // pred_fallthru
    _
  // Predicated region
  $region6: #{block_forward.1} parent=0 // pred_check
    _
  $region7: #{block_forward.1} parent=0 // pred_check_branch
    %11 = sbr.rel (0) target = $region9
  $region8: #{block_forward.1} parent=0 // pred_region
    _
  $region9: #{block_forward.1} parent=0 // pred_fallthru
    _
  // Predicated region
  $region10: #{block_forward.1} parent=0 // pred_check
    _
  $region11: #{block_forward.1} parent=0 // pred_check_branch
    %13 = sbr.rel (0) target = $region13
  $region12: #{block_forward.1} parent=0 // pred_region
    _
  $region13: #{block_forward.1} parent=0 // pred_fallthru
    _
  %v15 = vld [vmem:[%s0] sm:$0xff]
  %v16 = vld [vmem:[%s0 + $0x8] sm:$0xff]
  %v17 = vld [vmem:[%s0 + $0x10] sm:$0xff]
  %v18 = vld [vmem:[%s0 + $0x18] sm:$0xff]
  %v19 = vld [vmem:[%s0 + $0x20] sm:$0xff]
  %v20 = vld [vmem:[%s0 + $0x28] sm:$0xff]
  %v21 = vld [vmem:[%s0 + $0x30] sm:$0xff]
  %v22 = vld [vmem:[%s0 + $0x38] sm:$0xff]
  %v23 = vld [vmem:[%s0 + $0x40] sm:$0xff]
  %v24 = vld [vmem:[%s0 + $0x48] sm:$0xff]
  %v25 = vld [vmem:[%s0 + $0x50] sm:$0xff]
  %v26 = vld [vmem:[%s0 + $0x58] sm:$0xff]
  %v27 = vld [vmem:[%s0 + $0x60] sm:$0xff]
  %v28 = vld [vmem:[%s0 + $0x68] sm:$0xff]
  %v29 = vld [vmem:[%s0 + $0x70] sm:$0xff]
  %v30 = vld [vmem:[%s0 + $0x78] sm:$0xff]
  %v31 = vld [vmem:[%s0 + $0x80] sm:$0xff]
  %v32 = vld [vmem:[%s0 + $0x88] sm:$0xff]
  %v33 = vld [vmem:[%s0 + $0x90] sm:$0xff]
  %v34 = vld [vmem:[%s0 + $0x98] sm:$0xff]
  %v35 = vld [vmem:[%s0 + $0xa0] sm:$0xff]
  %v36 = vld [vmem:[%s0 + $0xa8] sm:$0xff]
  %v37 = vld [vmem:[%s0 + $0xb0] sm:$0xff]
  %v38 = vld [vmem:[%s0 + $0xb8] sm:$0xff]
  %v39 = vld [vmem:[%s0 + $0xc0] sm:$0xff]
  %v40 = vld [vmem:[%s0 + $0xc8] sm:$0xff]
  %v41 = vld [vmem:[%s0 + $0xd0] sm:$0xff]
  %v42 = vld [vmem:[%s0 + $0xd8] sm:$0xff]
  %v43 = vld [vmem:[%s0 + $0xe0] sm:$0xff]
  %v44 = vld [vmem:[%s0 + $0xe8] sm:$0xff]
  %v45 = vld [vmem:[%s0 + $0xf0] sm:$0xff]
  %v46 = vld [vmem:[%s0 + $0xf8] sm:$0xff]
  %v47 = vpack.c.bf16 %v16, %v15
  %v48 = vpack.c.bf16 %v18, %v17
  %v49 = vpack.c.bf16 %v20, %v19
  %v50 = vpack.c.bf16 %v22, %v21
  %v51 = vpack.c.bf16 %v24, %v23
  %v52 = vpack.c.bf16 %v26, %v25
  %v53 = vpack.c.bf16 %v28, %v27
  %v54 = vpack.c.bf16 %v30, %v29
  %v55 = vpack.c.bf16 %v32, %v31
  %v56 = vpack.c.bf16 %v34, %v33
  %v57 = vpack.c.bf16 %v36, %v35
  %v58 = vpack.c.bf16 %v38, %v37
  %v59 = vpack.c.bf16 %v40, %v39
  %v60 = vpack.c.bf16 %v42, %v41
  %v61 = vpack.c.bf16 %v44, %v43
  %v62 = vpack.c.bf16 %v46, %v45
  %v63 = vld [vmem:[%s1] sm:$0xf]
  %v64 = vld [vmem:[%s1 + $0x4] sm:$0xf]
  %v65 = vld [vmem:[%s1 + $0x8] sm:$0xf]
  %v66 = vld [vmem:[%s1 + $0xc] sm:$0xf]
  %v71 = vunpack.c.l.b16 %v63
  %v72 = vunpack.c.l.b16 %v64
  %v73 = vunpack.c.l.b16 %v65
  %v74 = vunpack.c.l.b16 %v66
  %v75 = vpack.c.b16 %v72, %v71
  %v76 = vpack.c.b16 %v74, %v73
  %vm79 = vcmask 261120
  %v81 = vsel %vm79, %v47, 0
  %v84 = vsel %vm79, %v48, 0
  %v87 = vsel %vm79, %v49, 0
  %v90 = vsel %vm79, %v50, 0
  %v93 = vsel %vm79, %v51, 0
  %v96 = vsel %vm79, %v52, 0
  %v99 = vsel %vm79, %v53, 0
  %v102 = vsel %vm79, %v54, 0
  %v105 = vsel %vm79, %v55, 0
  %v108 = vsel %vm79, %v56, 0
  %v111 = vsel %vm79, %v57, 0
  %v114 = vsel %vm79, %v58, 0
  %v117 = vsel %vm79, %v59, 0
  %v120 = vsel %vm79, %v60, 0
  %v123 = vsel %vm79, %v61, 0
  %v126 = vsel %vm79, %v62, 0
  %128 = vmatprep.subr.bf16.mxu0 0
  %129 = vmatpush1.bf16.msra.mxu0 0
  %130 = vmatprep.subr.bf16.mxu0 0
  %131 = vmatpush1.bf16.msra.mxu0 0
  %132 = vmatprep.subr.bf16.mxu0 0
  %133 = vmatpush1.bf16.msra.mxu0 0
  %134 = vmatprep.subr.bf16.mxu0 0
  %135 = vmatpush1.bf16.msra.mxu0 0
  %136 = vmatprep.subr.bf16.mxu0 0
  %137 = vmatpush1.bf16.msra.mxu0 0
  %138 = vmatprep.subr.bf16.mxu0 0
  %139 = vmatpush1.bf16.msra.mxu0 0
  %140 = vmatprep.subr.bf16.mxu0 0
  %141 = vmatpush1.bf16.msra.mxu0 %v76
  %142 = vmatprep.subr.bf16.mxu0 0
  %143 = vmatpush1.bf16.msra.mxu0 %v75
  %144 = vmatprep.subr.bf16.mxu0 0
  %145 = vmatpush2.bf16.msra.mxu0 0
  %146 = vmatprep.subr.bf16.mxu0 0
  %147 = vmatpush2.bf16.msra.mxu0 0
  %148 = vmatprep.subr.bf16.mxu0 0
  %149 = vmatpush2.bf16.msra.mxu0 0
  %150 = vmatprep.subr.bf16.mxu0 0
  %151 = vmatpush2.bf16.msra.mxu0 0
  %152 = vmatprep.subr.bf16.mxu0 0
  %153 = vmatpush2.bf16.msra.mxu0 0
  %154 = vmatprep.subr.bf16.mxu0 0
  %155 = vmatpush2.bf16.msra.mxu0 0
  %156 = vmatprep.subr.bf16.mxu0 0
  %157 = vmatpush2.bf16.msra.mxu0 0
  %158 = vmatprep.subr.bf16.mxu0 0
  %159 = vmatpush2.bf16.msra.mxu0 0
  %160 = vmatprep.mubr.bf16.mxu0 0
  %161 = vmatmul.mubr.bf16.gmra.mxu0 %v81
  %v162 = vpop.f32.mrf.mxu0
  %v163 = vadd.f32 0.0, %v162
  %v164 = vpop.f32.mrf.mxu0
  %v165 = vpop.f32.mrf.mxu0
  %v166 = vadd.f32 0.0, %v165
  %v167 = vpop.f32.mrf.mxu0
  %168 = vmatprep.mubr.bf16.mxu0 0
  %169 = vmatmul.mubr.bf16.gmra.mxu0 %v84
  %v170 = vpop.f32.mrf.mxu0
  %v171 = vadd.f32 0.0, %v170
  %v172 = vpop.f32.mrf.mxu0
  %v173 = vpop.f32.mrf.mxu0
  %v174 = vadd.f32 0.0, %v173
  %v175 = vpop.f32.mrf.mxu0
  %176 = vmatprep.mubr.bf16.mxu0 0
  %177 = vmatmul.mubr.bf16.gmra.mxu0 %v87
  %v178 = vpop.f32.mrf.mxu0
  %v179 = vadd.f32 0.0, %v178
  %v180 = vpop.f32.mrf.mxu0
  %v181 = vpop.f32.mrf.mxu0
  %v182 = vadd.f32 0.0, %v181
  %v183 = vpop.f32.mrf.mxu0
  %184 = vmatprep.mubr.bf16.mxu0 0
  %185 = vmatmul.mubr.bf16.gmra.mxu0 %v90
  %v186 = vpop.f32.mrf.mxu0
  %v187 = vadd.f32 0.0, %v186
  %v188 = vpop.f32.mrf.mxu0
  %v189 = vpop.f32.mrf.mxu0
  %v190 = vadd.f32 0.0, %v189
  %v191 = vpop.f32.mrf.mxu0
  %192 = vmatprep.mubr.bf16.mxu0 0
  %193 = vmatmul.mubr.bf16.gmra.mxu0 %v93
  %v194 = vpop.f32.mrf.mxu0
  %v195 = vadd.f32 0.0, %v194
  %v196 = vpop.f32.mrf.mxu0
  %v197 = vpop.f32.mrf.mxu0
  %v198 = vadd.f32 0.0, %v197
  %v199 = vpop.f32.mrf.mxu0
  %200 = vmatprep.mubr.bf16.mxu0 0
  %201 = vmatmul.mubr.bf16.gmra.mxu0 %v96
  %v202 = vpop.f32.mrf.mxu0
  %v203 = vadd.f32 0.0, %v202
  %v204 = vpop.f32.mrf.mxu0
  %v205 = vpop.f32.mrf.mxu0
  %v206 = vadd.f32 0.0, %v205
  %v207 = vpop.f32.mrf.mxu0
  %208 = vmatprep.mubr.bf16.mxu0 0
  %209 = vmatmul.mubr.bf16.gmra.mxu0 %v99
  %v210 = vpop.f32.mrf.mxu0
  %v211 = vadd.f32 0.0, %v210
  %v212 = vpop.f32.mrf.mxu0
  %v213 = vpop.f32.mrf.mxu0
  %v214 = vadd.f32 0.0, %v213
  %v215 = vpop.f32.mrf.mxu0
  %216 = vmatprep.mubr.bf16.mxu0 0
  %217 = vmatmul.mubr.bf16.gmra.mxu0 %v102
  %v218 = vpop.f32.mrf.mxu0
  %v219 = vadd.f32 0.0, %v218
  %v220 = vpop.f32.mrf.mxu0
  %v221 = vpop.f32.mrf.mxu0
  %v222 = vadd.f32 0.0, %v221
  %v223 = vpop.f32.mrf.mxu0
  %224 = vmatprep.mubr.bf16.mxu0 0
  %225 = vmatmul.mubr.bf16.gmra.mxu0 %v105
  %v226 = vpop.f32.mrf.mxu0
  %v227 = vadd.f32 0.0, %v226
  %v228 = vpop.f32.mrf.mxu0
  %v229 = vpop.f32.mrf.mxu0
  %v230 = vadd.f32 0.0, %v229
  %v231 = vpop.f32.mrf.mxu0
  %232 = vmatprep.mubr.bf16.mxu0 0
  %233 = vmatmul.mubr.bf16.gmra.mxu0 %v108
  %v234 = vpop.f32.mrf.mxu0
  %v235 = vadd.f32 0.0, %v234
  %v236 = vpop.f32.mrf.mxu0
  %v237 = vpop.f32.mrf.mxu0
  %v238 = vadd.f32 0.0, %v237
  %v239 = vpop.f32.mrf.mxu0
  %240 = vmatprep.mubr.bf16.mxu0 0
  %241 = vmatmul.mubr.bf16.gmra.mxu0 %v111
  %v242 = vpop.f32.mrf.mxu0
  %v243 = vadd.f32 0.0, %v242
  %v244 = vpop.f32.mrf.mxu0
  %v245 = vpop.f32.mrf.mxu0
  %v246 = vadd.f32 0.0, %v245
  %v247 = vpop.f32.mrf.mxu0
  %248 = vmatprep.mubr.bf16.mxu0 0
  %249 = vmatmul.mubr.bf16.gmra.mxu0 %v114
  %v250 = vpop.f32.mrf.mxu0
  %v251 = vadd.f32 0.0, %v250
  %v252 = vpop.f32.mrf.mxu0
  %v253 = vpop.f32.mrf.mxu0
  %v254 = vadd.f32 0.0, %v253
  %v255 = vpop.f32.mrf.mxu0
  %256 = vmatprep.mubr.bf16.mxu0 0
  %257 = vmatmul.mubr.bf16.gmra.mxu0 %v117
  %v258 = vpop.f32.mrf.mxu0
  %v259 = vadd.f32 0.0, %v258
  %v260 = vpop.f32.mrf.mxu0
  %v261 = vpop.f32.mrf.mxu0
  %v262 = vadd.f32 0.0, %v261
  %v263 = vpop.f32.mrf.mxu0
  %264 = vmatprep.mubr.bf16.mxu0 0
  %265 = vmatmul.mubr.bf16.gmra.mxu0 %v120
  %v266 = vpop.f32.mrf.mxu0
  %v267 = vadd.f32 0.0, %v266
  %v268 = vpop.f32.mrf.mxu0
  %v269 = vpop.f32.mrf.mxu0
  %v270 = vadd.f32 0.0, %v269
  %v271 = vpop.f32.mrf.mxu0
  %272 = vmatprep.mubr.bf16.mxu0 0
  %273 = vmatmul.mubr.bf16.gmra.mxu0 %v123
  %v274 = vpop.f32.mrf.mxu0
  %v275 = vadd.f32 0.0, %v274
  %v276 = vpop.f32.mrf.mxu0
  %v277 = vpop.f32.mrf.mxu0
  %v278 = vadd.f32 0.0, %v277
  %v279 = vpop.f32.mrf.mxu0
  %280 = vmatprep.mubr.bf16.mxu0 0
  %281 = vmatmul.mubr.bf16.gmra.mxu0 %v126
  %v282 = vpop.f32.mrf.mxu0
  %v283 = vadd.f32 0.0, %v282
  %v284 = vpop.f32.mrf.mxu0
  %v285 = vpop.f32.mrf.mxu0
  %v286 = vadd.f32 0.0, %v285
  %v287 = vpop.f32.mrf.mxu0
  %288 = vdwg.mxu0
  %v289 = vmax.f32 %v163, 0.0
  %v290 = vmax.f32 %v166, 0.0
  %v291 = vmax.f32 %v171, 0.0
  %v292 = vmax.f32 %v174, 0.0
  %v293 = vmax.f32 %v179, 0.0
  %v294 = vmax.f32 %v182, 0.0
  %v295 = vmax.f32 %v187, 0.0
  %v296 = vmax.f32 %v190, 0.0
  %v297 = vmax.f32 %v195, 0.0
  %v298 = vmax.f32 %v198, 0.0
  %v299 = vmax.f32 %v203, 0.0
  %v300 = vmax.f32 %v206, 0.0
  %v301 = vmax.f32 %v211, 0.0
  %v302 = vmax.f32 %v214, 0.0
  %v303 = vmax.f32 %v219, 0.0
  %v304 = vmax.f32 %v222, 0.0
  %v305 = vmax.f32 %v227, 0.0
  %v306 = vmax.f32 %v230, 0.0
  %v307 = vmax.f32 %v235, 0.0
  %v308 = vmax.f32 %v238, 0.0
  %v309 = vmax.f32 %v243, 0.0
  %v310 = vmax.f32 %v246, 0.0
  %v311 = vmax.f32 %v251, 0.0
  %v312 = vmax.f32 %v254, 0.0
  %v313 = vmax.f32 %v259, 0.0
  %v314 = vmax.f32 %v262, 0.0
  %v315 = vmax.f32 %v267, 0.0
  %v316 = vmax.f32 %v270, 0.0
  %v317 = vmax.f32 %v275, 0.0
  %v318 = vmax.f32 %v278, 0.0
  %v319 = vmax.f32 %v283, 0.0
  %v320 = vmax.f32 %v286, 0.0
  %v321 = vpack.c.bf16 %v290, %v289
  %v322 = vpack.c.bf16 %v292, %v291
  %v323 = vpack.c.bf16 %v294, %v293
  %v324 = vpack.c.bf16 %v296, %v295
  %v325 = vpack.c.bf16 %v298, %v297
  %v326 = vpack.c.bf16 %v300, %v299
  %v327 = vpack.c.bf16 %v302, %v301
  %v328 = vpack.c.bf16 %v304, %v303
  %v329 = vpack.c.bf16 %v306, %v305
  %v330 = vpack.c.bf16 %v308, %v307
  %v331 = vpack.c.bf16 %v310, %v309
  %v332 = vpack.c.bf16 %v312, %v311
  %v333 = vpack.c.bf16 %v314, %v313
  %v334 = vpack.c.bf16 %v316, %v315
  %v335 = vpack.c.bf16 %v318, %v317
  %v336 = vpack.c.bf16 %v320, %v319
  %v337 = vld [vmem:[%s2] sm:$0xf]
  %v338 = vld [vmem:[%s2 + $0x4] sm:$0xf]
  %v339 = vld [vmem:[%s2 + $0x8] sm:$0xf]
  %v340 = vld [vmem:[%s2 + $0xc] sm:$0xf]
  %v341 = vld [vmem:[%s2 + $0x10] sm:$0xf]
  %v342 = vld [vmem:[%s2 + $0x14] sm:$0xf]
  %v343 = vld [vmem:[%s2 + $0x18] sm:$0xf]
  %v344 = vld [vmem:[%s2 + $0x1c] sm:$0xf]
  %v345 = vld [vmem:[%s2 + $0x20] sm:$0xf]
  %v346 = vld [vmem:[%s2 + $0x24] sm:$0xf]
  %v347 = vld [vmem:[%s2 + $0x28] sm:$0xf]
  %v348 = vld [vmem:[%s2 + $0x2c] sm:$0xf]
  %v349 = vld [vmem:[%s2 + $0x30] sm:$0xf]
  %v350 = vld [vmem:[%s2 + $0x34] sm:$0xf]
  %v351 = vld [vmem:[%s2 + $0x38] sm:$0xf]
  %v352 = vld [vmem:[%s2 + $0x3c] sm:$0xf]
  %v369 = vunpack.c.l.b16 %v337
  %v370 = vunpack.c.l.b16 %v338
  %v371 = vunpack.c.l.b16 %v339
  %v372 = vunpack.c.l.b16 %v340
  %v373 = vunpack.c.l.b16 %v341
  %v374 = vunpack.c.l.b16 %v342
  %v375 = vunpack.c.l.b16 %v343
  %v376 = vunpack.c.l.b16 %v344
  %v377 = vunpack.c.l.b16 %v345
  %v378 = vunpack.c.l.b16 %v346
  %v379 = vunpack.c.l.b16 %v347
  %v380 = vunpack.c.l.b16 %v348
  %v381 = vunpack.c.l.b16 %v349
  %v382 = vunpack.c.l.b16 %v350
  %v383 = vunpack.c.l.b16 %v351
  %v384 = vunpack.c.l.b16 %v352
  %v385 = vpack.c.b16 %v370, %v369
  %v386 = vpack.c.b16 %v372, %v371
  %v387 = vpack.c.b16 %v374, %v373
  %v388 = vpack.c.b16 %v376, %v375
  %v389 = vpack.c.b16 %v378, %v377
  %v390 = vpack.c.b16 %v380, %v379
  %v391 = vpack.c.b16 %v382, %v381
  %v392 = vpack.c.b16 %v384, %v383
  %401 = vmatprep.subr.bf16.mxu0 0
  %402 = vmatpush1.bf16.msra.mxu0 %v392
  %403 = vmatprep.subr.bf16.mxu0 0
  %404 = vmatpush1.bf16.msra.mxu0 %v391
  %405 = vmatprep.subr.bf16.mxu0 0
  %406 = vmatpush1.bf16.msra.mxu0 %v390
  %407 = vmatprep.subr.bf16.mxu0 0
  %408 = vmatpush1.bf16.msra.mxu0 %v389
  %409 = vmatprep.subr.bf16.mxu0 0
  %410 = vmatpush1.bf16.msra.mxu0 %v388
  %411 = vmatprep.subr.bf16.mxu0 0
  %412 = vmatpush1.bf16.msra.mxu0 %v387
  %413 = vmatprep.subr.bf16.mxu0 0
  %414 = vmatpush1.bf16.msra.mxu0 %v386
  %415 = vmatprep.subr.bf16.mxu0 0
  %416 = vmatpush1.bf16.msra.mxu0 %v385
  %417 = vmatprep.subr.bf16.mxu0 0
  %418 = vmatpush2.bf16.msra.mxu0 0
  %419 = vmatprep.subr.bf16.mxu0 0
  %420 = vmatpush2.bf16.msra.mxu0 0
  %421 = vmatprep.subr.bf16.mxu0 0
  %422 = vmatpush2.bf16.msra.mxu0 0
  %423 = vmatprep.subr.bf16.mxu0 0
  %424 = vmatpush2.bf16.msra.mxu0 0
  %425 = vmatprep.subr.bf16.mxu0 0
  %426 = vmatpush2.bf16.msra.mxu0 0
  %427 = vmatprep.subr.bf16.mxu0 0
  %428 = vmatpush2.bf16.msra.mxu0 0
  %429 = vmatprep.subr.bf16.mxu0 0
  %430 = vmatpush2.bf16.msra.mxu0 0
  %431 = vmatprep.subr.bf16.mxu0 0
  %432 = vmatpush2.bf16.msra.mxu0 0
  %433 = vmatprep.mubr.bf16.mxu0 0
  %434 = vmatmul.mubr.bf16.gmra.mxu0 %v321
  %v435 = vpop.f32.mrf.mxu0
  %v436 = vadd.f32 0.0, %v435
  %v437 = vpop.f32.mrf.mxu0
  %v438 = vpop.f32.mrf.mxu0
  %v439 = vadd.f32 0.0, %v438
  %v440 = vpop.f32.mrf.mxu0
  %441 = vmatprep.mubr.bf16.mxu0 0
  %442 = vmatmul.mubr.bf16.gmra.mxu0 %v322
  %v443 = vpop.f32.mrf.mxu0
  %v444 = vadd.f32 0.0, %v443
  %v445 = vpop.f32.mrf.mxu0
  %v446 = vpop.f32.mrf.mxu0
  %v447 = vadd.f32 0.0, %v446
  %v448 = vpop.f32.mrf.mxu0
  %449 = vmatprep.mubr.bf16.mxu0 0
  %450 = vmatmul.mubr.bf16.gmra.mxu0 %v323
  %v451 = vpop.f32.mrf.mxu0
  %v452 = vadd.f32 0.0, %v451
  %v453 = vpop.f32.mrf.mxu0
  %v454 = vpop.f32.mrf.mxu0
  %v455 = vadd.f32 0.0, %v454
  %v456 = vpop.f32.mrf.mxu0
  %457 = vmatprep.mubr.bf16.mxu0 0
  %458 = vmatmul.mubr.bf16.gmra.mxu0 %v324
  %v459 = vpop.f32.mrf.mxu0
  %v460 = vadd.f32 0.0, %v459
  %v461 = vpop.f32.mrf.mxu0
  %v462 = vpop.f32.mrf.mxu0
  %v463 = vadd.f32 0.0, %v462
  %v464 = vpop.f32.mrf.mxu0
  %465 = vmatprep.mubr.bf16.mxu0 0
  %466 = vmatmul.mubr.bf16.gmra.mxu0 %v325
  %v467 = vpop.f32.mrf.mxu0
  %v468 = vadd.f32 0.0, %v467
  %v469 = vpop.f32.mrf.mxu0
  %v470 = vpop.f32.mrf.mxu0
  %v471 = vadd.f32 0.0, %v470
  %v472 = vpop.f32.mrf.mxu0
  %473 = vmatprep.mubr.bf16.mxu0 0
  %474 = vmatmul.mubr.bf16.gmra.mxu0 %v326
  %v475 = vpop.f32.mrf.mxu0
  %v476 = vadd.f32 0.0, %v475
  %v477 = vpop.f32.mrf.mxu0
  %v478 = vpop.f32.mrf.mxu0
  %v479 = vadd.f32 0.0, %v478
  %v480 = vpop.f32.mrf.mxu0
  %481 = vmatprep.mubr.bf16.mxu0 0
  %482 = vmatmul.mubr.bf16.gmra.mxu0 %v327
  %v483 = vpop.f32.mrf.mxu0
  %v484 = vadd.f32 0.0, %v483
  %v485 = vpop.f32.mrf.mxu0
  %v486 = vpop.f32.mrf.mxu0
  %v487 = vadd.f32 0.0, %v486
  %v488 = vpop.f32.mrf.mxu0
  %489 = vmatprep.mubr.bf16.mxu0 0
  %490 = vmatmul.mubr.bf16.gmra.mxu0 %v328
  %v491 = vpop.f32.mrf.mxu0
  %v492 = vadd.f32 0.0, %v491
  %v493 = vpop.f32.mrf.mxu0
  %v494 = vpop.f32.mrf.mxu0
  %v495 = vadd.f32 0.0, %v494
  %v496 = vpop.f32.mrf.mxu0
  %497 = vmatprep.mubr.bf16.mxu0 0
  %498 = vmatmul.mubr.bf16.gmra.mxu0 %v329
  %v499 = vpop.f32.mrf.mxu0
  %v500 = vadd.f32 0.0, %v499
  %v501 = vpop.f32.mrf.mxu0
  %v502 = vpop.f32.mrf.mxu0
  %v503 = vadd.f32 0.0, %v502
  %v504 = vpop.f32.mrf.mxu0
  %505 = vmatprep.mubr.bf16.mxu0 0
  %506 = vmatmul.mubr.bf16.gmra.mxu0 %v330
  %v507 = vpop.f32.mrf.mxu0
  %v508 = vadd.f32 0.0, %v507
  %v509 = vpop.f32.mrf.mxu0
  %v510 = vpop.f32.mrf.mxu0
  %v511 = vadd.f32 0.0, %v510
  %v512 = vpop.f32.mrf.mxu0
  %513 = vmatprep.mubr.bf16.mxu0 0
  %514 = vmatmul.mubr.bf16.gmra.mxu0 %v331
  %v515 = vpop.f32.mrf.mxu0
  %v516 = vadd.f32 0.0, %v515
  %v517 = vpop.f32.mrf.mxu0
  %v518 = vpop.f32.mrf.mxu0
  %v519 = vadd.f32 0.0, %v518
  %v520 = vpop.f32.mrf.mxu0
  %521 = vmatprep.mubr.bf16.mxu0 0
  %522 = vmatmul.mubr.bf16.gmra.mxu0 %v332
  %v523 = vpop.f32.mrf.mxu0
  %v524 = vadd.f32 0.0, %v523
  %v525 = vpop.f32.mrf.mxu0
  %v526 = vpop.f32.mrf.mxu0
  %v527 = vadd.f32 0.0, %v526
  %v528 = vpop.f32.mrf.mxu0
  %529 = vmatprep.mubr.bf16.mxu0 0
  %530 = vmatmul.mubr.bf16.gmra.mxu0 %v333
  %v531 = vpop.f32.mrf.mxu0
  %v532 = vadd.f32 0.0, %v531
  %v533 = vpop.f32.mrf.mxu0
  %v534 = vpop.f32.mrf.mxu0
  %v535 = vadd.f32 0.0, %v534
  %v536 = vpop.f32.mrf.mxu0
  %537 = vmatprep.mubr.bf16.mxu0 0
  %538 = vmatmul.mubr.bf16.gmra.mxu0 %v334
  %v539 = vpop.f32.mrf.mxu0
  %v540 = vadd.f32 0.0, %v539
  %v541 = vpop.f32.mrf.mxu0
  %v542 = vpop.f32.mrf.mxu0
  %v543 = vadd.f32 0.0, %v542
  %v544 = vpop.f32.mrf.mxu0
  %545 = vmatprep.mubr.bf16.mxu0 0
  %546 = vmatmul.mubr.bf16.gmra.mxu0 %v335
  %v547 = vpop.f32.mrf.mxu0
  %v548 = vadd.f32 0.0, %v547
  %v549 = vpop.f32.mrf.mxu0
  %v550 = vpop.f32.mrf.mxu0
  %v551 = vadd.f32 0.0, %v550
  %v552 = vpop.f32.mrf.mxu0
  %553 = vmatprep.mubr.bf16.mxu0 0
  %554 = vmatmul.mubr.bf16.gmra.mxu0 %v336
  %v555 = vpop.f32.mrf.mxu0
  %v556 = vadd.f32 0.0, %v555
  %v557 = vpop.f32.mrf.mxu0
  %v558 = vpop.f32.mrf.mxu0
  %v559 = vadd.f32 0.0, %v558
  %v560 = vpop.f32.mrf.mxu0
  %561 = vdwg.mxu0
  %562 = vst [vmem:[%s3] sm:$0xff] %v436
  %563 = vst [vmem:[%s3 + $0x8] sm:$0xff] %v439
  %564 = vst [vmem:[%s3 + $0x10] sm:$0xff] %v444
  %565 = vst [vmem:[%s3 + $0x18] sm:$0xff] %v447
  %566 = vst [vmem:[%s3 + $0x20] sm:$0xff] %v452
  %567 = vst [vmem:[%s3 + $0x28] sm:$0xff] %v455
  %568 = vst [vmem:[%s3 + $0x30] sm:$0xff] %v460
  %569 = vst [vmem:[%s3 + $0x38] sm:$0xff] %v463
  %570 = vst [vmem:[%s3 + $0x40] sm:$0xff] %v468
  %571 = vst [vmem:[%s3 + $0x48] sm:$0xff] %v471
  %572 = vst [vmem:[%s3 + $0x50] sm:$0xff] %v476
  %573 = vst [vmem:[%s3 + $0x58] sm:$0xff] %v479
  %574 = vst [vmem:[%s3 + $0x60] sm:$0xff] %v484
  %575 = vst [vmem:[%s3 + $0x68] sm:$0xff] %v487
  %576 = vst [vmem:[%s3 + $0x70] sm:$0xff] %v492
  %577 = vst [vmem:[%s3 + $0x78] sm:$0xff] %v495
  %578 = vst [vmem:[%s3 + $0x80] sm:$0xff] %v500
  %579 = vst [vmem:[%s3 + $0x88] sm:$0xff] %v503
  %580 = vst [vmem:[%s3 + $0x90] sm:$0xff] %v508
  %581 = vst [vmem:[%s3 + $0x98] sm:$0xff] %v511
  %582 = vst [vmem:[%s3 + $0xa0] sm:$0xff] %v516
  %583 = vst [vmem:[%s3 + $0xa8] sm:$0xff] %v519
  %584 = vst [vmem:[%s3 + $0xb0] sm:$0xff] %v524
  %585 = vst [vmem:[%s3 + $0xb8] sm:$0xff] %v527
  %586 = vst [vmem:[%s3 + $0xc0] sm:$0xff] %v532
  %587 = vst [vmem:[%s3 + $0xc8] sm:$0xff] %v535
  %588 = vst [vmem:[%s3 + $0xd0] sm:$0xff] %v540
  %589 = vst [vmem:[%s3 + $0xd8] sm:$0xff] %v543
  %590 = vst [vmem:[%s3 + $0xe0] sm:$0xff] %v548
  %591 = vst [vmem:[%s3 + $0xe8] sm:$0xff] %v551
  %592 = vst [vmem:[%s3 + $0xf0] sm:$0xff] %v556
  %593 = vst [vmem:[%s3 + $0xf8] sm:$0xff] %v559
  // Predicated region
  $region14: #{block_forward.1} parent=0 // pred_check
    _
  $region15: #{block_forward.1} parent=0 // pred_check_branch
    %595 = sbr.rel (0) target = $region17
  $region16: #{block_forward.1} parent=0 // pred_region
    _
  $region17: #{block_forward.1} parent=0 // pred_fallthru
    _
  // Predicated region
  $region18: #{block_forward.1} parent=0 // pred_check
    _
  $region19: #{block_forward.1} parent=0 // pred_check_branch
    %597 = sbr.rel (0) target = $region21
  $region20: #{block_forward.1} parent=0 // pred_region
    _
  $region21: #{block_forward.1} parent=0 // pred_fallthru
    _

</llo_original>
